<compile_context>
chip_gen: v5e
topology: v5e:2x2
jax: 0.10.0
libtpu: 0.0.40
codegen_flags: <defaults>
</compile_context>

<pallas_src>
import functools

import jax
import jax.numpy as jnp
from jax.experimental import pallas as pl
from jax.experimental.pallas import tpu as pltpu


# ---------------------------------------------------------------------------
# Kernels
# ---------------------------------------------------------------------------

def _se_kernel(x_ref, w1_ref, b1_ref, w2_ref, b2_ref, o_ref, *, inv_hw):
    """Single-pass SE: whole (tb, C, HW) block resident in VMEM."""
    # Squeeze: global average pool (sum * 1/HW), accumulated in f32 without
    # keeping a full f32 copy of the block.
    pooled = jnp.sum(x_ref[...].astype(jnp.float32), axis=-1) * inv_hw    # (tb, C)

    # Excite: fc1 (1x1 conv) + SiLU, fc2 (1x1 conv) + Sigmoid.
    h = jnp.dot(pooled, w1_ref[...],
                preferred_element_type=jnp.float32) + b1_ref[...]          # (tb, Cr)
    h = h * jax.nn.sigmoid(h)
    s = jax.nn.sigmoid(jnp.dot(h, w2_ref[...],
                               preferred_element_type=jnp.float32)
                       + b2_ref[...])                                      # (tb, C)

    # Scale: re-read the ref (cheap VMEM re-read), multiply in f32, cast once
    # at the store (HBM-bound either way; avoids the useless early downcast).
    o_ref[...] = (x_ref[...].astype(jnp.float32) * s[:, :, None]).astype(o_ref.dtype)


def _pool_excite_kernel(x_ref, w1_ref, b1_ref, w2_ref, b2_ref, s_ref,
                        *, inv_hw, hw, thw):
    """Phase 1 of the chunked fallback: accumulate the pool over HW chunks,
    finalize with the two 1x1-conv matmuls.  s_ref (tb, C) f32 is the
    resident accumulator (same output block across the HW grid axis)."""
    h_idx = pl.program_id(1)

    @pl.when(h_idx == 0)
    def _():
        s_ref[...] = jnp.zeros_like(s_ref)

    # Mask the ragged HW tail: OOB lanes of a partial block are unspecified.
    base = h_idx * thw
    lane = jax.lax.broadcasted_iota(jnp.int32, (1, 1, thw), 2)
    valid = (base + lane) < hw
    xf = jnp.where(valid, x_ref[...].astype(jnp.float32), 0.0)
    s_ref[...] += jnp.sum(xf, axis=-1)

    @pl.when(h_idx == pl.num_programs(1) - 1)
    def _():
        pooled = s_ref[...] * inv_hw
        h = jnp.dot(pooled, w1_ref[...],
                    preferred_element_type=jnp.float32) + b1_ref[...]
        h = h * jax.nn.sigmoid(h)
        s_ref[...] = jax.nn.sigmoid(
            jnp.dot(h, w2_ref[...], preferred_element_type=jnp.float32)
            + b2_ref[...])


def _scale_kernel(x_ref, s_ref, o_ref):
    """Phase 2 of the chunked fallback: stream x and scale per channel."""
    s = s_ref[...].astype(jnp.float32)
    o_ref[...] = (x_ref[...].astype(jnp.float32) * s[:, :, None]).astype(o_ref.dtype)


# ---------------------------------------------------------------------------
# Per-chip sizing
# ---------------------------------------------------------------------------

def _chip_params():
    """Derive (vmem_limit_bytes, per-block budget, two_tensorcores)."""
    vmem_cap = None
    try:
        info = pltpu.get_tpu_info()
        for name in ("vmem_capacity_bytes", "vmem_size_bytes", "vmem_bytes"):
            v = getattr(info, name, None)
            if v:
                vmem_cap = int(v)
                break
    except Exception:
        vmem_cap = None
    if not vmem_cap:
        vmem_cap = 64 << 20            # unknown -> assume v7x-sized (safe everywhere)
    # v7x: 64 MiB/TC and 2 TensorCores; v5e/v6e: 128 MiB, single TC.
    two_tc = vmem_cap <= (96 << 20)
    vmem_limit = min(vmem_cap - (8 << 20), 100 << 20)   # leave compiler headroom
    block_budget = max(2 << 20, vmem_limit // 6)        # in+out double-buffered = 4x block
    return vmem_limit, block_budget, two_tc


# ---------------------------------------------------------------------------
# Wrapper
# ---------------------------------------------------------------------------

def se_block(x_nchw, w1, b1, w2, b2, *,
             vmem_limit_bytes=None, block_budget_bytes=None, donate_x=False):
    """SEBlock forward.

    Args:
      x_nchw: (N, C, H, W)
      w1: (Cr, C)  fc1 weight (Conv2d(C, Cr, 1) weight squeezed)
      b1: (Cr,)    fc1 bias
      w2: (C, Cr)  fc2 weight
      b2: (C,)     fc2 bias
    Returns:
      (N, C, H, W), same dtype as x_nchw.
    """
    N, C, H, W = x_nchw.shape
    Cr = w1.shape[0]
    HW = H * W
    itemsize = jnp.dtype(x_nchw.dtype).itemsize

    auto_limit, auto_budget, two_tc = _chip_params()
    vmem_limit = int(vmem_limit_bytes or auto_limit)
    budget = int(block_budget_bytes or auto_budget)

    # Free metadata reshape; no padding, no copies.
    x = x_nchw.reshape(N, C, HW)

    # Pre-transpose weights so the kernel does (tb,C)@(C,Cr) and (tb,Cr)@(Cr,C).
    w1_t = jnp.asarray(w1).T.reshape(C, Cr)
    w2_t = jnp.asarray(w2).T.reshape(Cr, C)
    b1_2d = jnp.asarray(b1).reshape(1, Cr)
    b2_2d = jnp.asarray(b2).reshape(1, C)

    row_bytes = C * HW * itemsize     # one batch row of x in VMEM

    if row_bytes <= budget:
        out = _se_single_pass(x, w1_t, b1_2d, w2_t, b2_2d,
                              N=N, C=C, Cr=Cr, HW=HW, itemsize=itemsize,
                              row_bytes=row_bytes, budget=budget,
                              vmem_limit=vmem_limit, two_tc=two_tc,
                              donate_x=donate_x)
    else:
        out = _se_two_phase(x, w1_t, b1_2d, w2_t, b2_2d,
                            N=N, C=C, Cr=Cr, HW=HW, itemsize=itemsize,
                            budget=budget, vmem_limit=vmem_limit)

    return out.reshape(N, C, H, W)


def _se_single_pass(x, w1_t, b1_2d, w2_t, b2_2d, *, N, C, Cr, HW, itemsize,
                    row_bytes, budget, vmem_limit, two_tc, donate_x):
    # Batch tile: as big as the block budget allows.  On 2-TC chips target
    # >= 4 grid steps (pipelined pair per core) while keeping blocks >= ~1 MiB.
    tb = max(1, min(N, budget // max(row_bytes, 1)))
    if two_tc and N >= 4:
        tb_steps = max(1, N // 4)
        tb_1mb = max(1, -(-(1 << 20) // max(row_bytes, 1)))
        tb = min(tb, max(tb_steps, tb_1mb))
    grid = (pl.cdiv(N, tb),)          # ragged last block is masked by Pallas

    cost = pl.CostEstimate(
        flops=int(3 * N * C * HW + 4 * N * C * Cr),
        transcendentals=int(N * (Cr + C)),
        bytes_accessed=int(2 * N * C * HW * itemsize),
    )

    kernel = functools.partial(_se_kernel, inv_hw=1.0 / float(HW))

    return pl.pallas_call(
        kernel,
        out_shape=jax.ShapeDtypeStruct((N, C, HW), x.dtype),
        grid_spec=pltpu.PrefetchScalarGridSpec(
            num_scalar_prefetch=0,
            grid=grid,
            in_specs=[
                pl.BlockSpec((tb, C, HW), lambda n: (n, 0, 0)),   # x block
                pl.BlockSpec((C, Cr), lambda n: (0, 0)),          # w1^T
                pl.BlockSpec((1, Cr), lambda n: (0, 0)),          # b1
                pl.BlockSpec((Cr, C), lambda n: (0, 0)),          # w2^T
                pl.BlockSpec((1, C), lambda n: (0, 0)),           # b2
            ],
            out_specs=pl.BlockSpec((tb, C, HW), lambda n: (n, 0, 0)),
        ),
        compiler_params=pltpu.CompilerParams(
            dimension_semantics=("parallel",),
            vmem_limit_bytes=vmem_limit,
        ),
        cost_estimate=cost,
        input_output_aliases=({0: 0} if donate_x else {}),
    )(x, w1_t, b1_2d, w2_t, b2_2d)


def _se_two_phase(x, w1_t, b1_2d, w2_t, b2_2d, *, N, C, Cr, HW, itemsize,
                  budget, vmem_limit):
    # Batch tile must satisfy the (8,128) rule on the (tb, C) pooled block:
    # tb == N or tb a multiple of 8.
    if N < 8:
        tb = N
    else:
        tb = (budget // max(C * 128 * itemsize, 1)) // 8 * 8
        tb = max(8, min(tb, (N // 8) * 8))
    hw_ceil = ((HW + 127) // 128) * 128
    thw = (budget // max(tb * C * itemsize, 1)) // 128 * 128
    thw = max(128, min(thw, hw_ceil))

    n_tiles = pl.cdiv(N, tb)
    hw_tiles = pl.cdiv(HW, thw)

    # Phase 1: pooled sums over HW chunks + excitation matmuls -> s (N, C) f32.
    pool_kernel = functools.partial(_pool_excite_kernel,
                                    inv_hw=1.0 / float(HW), hw=HW, thw=thw)
    s = pl.pallas_call(
        pool_kernel,
        out_shape=jax.ShapeDtypeStruct((N, C), jnp.float32),
        grid_spec=pltpu.PrefetchScalarGridSpec(
            num_scalar_prefetch=0,
            grid=(n_tiles, hw_tiles),
            in_specs=[
                pl.BlockSpec((tb, C, thw), lambda n, h: (n, 0, h)),
                pl.BlockSpec((C, Cr), lambda n, h: (0, 0)),
                pl.BlockSpec((1, Cr), lambda n, h: (0, 0)),
                pl.BlockSpec((Cr, C), lambda n, h: (0, 0)),
                pl.BlockSpec((1, C), lambda n, h: (0, 0)),
            ],
            out_specs=pl.BlockSpec((tb, C), lambda n, h: (n, 0)),
        ),
        compiler_params=pltpu.CompilerParams(
            dimension_semantics=("parallel", "arbitrary"),
            vmem_limit_bytes=vmem_limit,
        ),
    )(x, w1_t, b1_2d, w2_t, b2_2d)

    # Phase 2: stream x again and scale per channel.
    return pl.pallas_call(
        _scale_kernel,
        out_shape=jax.ShapeDtypeStruct((N, C, HW), x.dtype),
        grid_spec=pltpu.PrefetchScalarGridSpec(
            num_scalar_prefetch=0,
            grid=(n_tiles, hw_tiles),
            in_specs=[
                pl.BlockSpec((tb, C, thw), lambda n, h: (n, 0, h)),
                pl.BlockSpec((tb, C), lambda n, h: (n, 0)),
            ],
            out_specs=pl.BlockSpec((tb, C, thw), lambda n, h: (n, 0, h)),
        ),
        compiler_params=pltpu.CompilerParams(
            dimension_semantics=("parallel", "parallel"),
            vmem_limit_bytes=vmem_limit,
        ),
    )(x, s)


# ---------------------------------------------------------------------------
# Reference + test
# ---------------------------------------------------------------------------

def _reference(x, w1, b1, w2, b2):
    # Pure-JAX reference mirroring the PyTorch module.
    pooled = jnp.mean(x, axis=(2, 3))                 # (N, C)
    h = pooled @ w1.T + b1                            # (N, Cr)
    h = h * jax.nn.sigmoid(h)                         # SiLU
    s = jax.nn.sigmoid(h @ w2.T + b2)                 # (N, C)
    return x * s[:, :, None, None]


if __name__ == "__main__":
    key = jax.random.PRNGKey(0)
    N, C, H, W = 2, 8, 16, 16
    reduction = 4
    Cr = C // reduction

    k_x, k_w1, k_b1, k_w2, k_b2 = jax.random.split(key, 5)
    x = jax.random.normal(k_x, (N, C, H, W), dtype=jnp.float32)

    # Deterministic parameter init (Conv2d 1x1 == per-channel linear).
    bound1 = 1.0 / jnp.sqrt(C)
    w1 = jax.random.uniform(k_w1, (Cr, C), minval=-bound1, maxval=bound1)
    b1 = jax.random.uniform(k_b1, (Cr,), minval=-bound1, maxval=bound1)
    bound2 = 1.0 / jnp.sqrt(Cr)
    w2 = jax.random.uniform(k_w2, (C, Cr), minval=-bound2, maxval=bound2)
    b2 = jax.random.uniform(k_b2, (C,), minval=-bound2, maxval=bound2)

    y_ref = _reference(x, w1, b1, w2, b2)

    # 1) Default single-pass path (no wrapper padding, lane-dense blocks).
    y = jax.block_until_ready(se_block(x, w1, b1, w2, b2))
    assert y.shape == (N, C, H, W)
    assert jnp.allclose(y, y_ref, atol=1e-5, rtol=1e-5), "single-pass mismatch"

    # 2) Force the HW-chunked two-phase fallback with a tiny block budget
    #    (exercises the accumulator + pl.when finalize over 2 HW chunks).
    y2 = jax.block_until_ready(se_block(x, w1, b1, w2, b2,
                                        block_budget_bytes=4096))
    assert jnp.allclose(y2, y_ref, atol=1e-5, rtol=1e-5), "chunked mismatch"

    # 3) Ragged shapes: HW % 128 != 0 and odd N, on both paths.
    N3, H3, W3 = 3, 5, 5
    x3 = jax.random.normal(k_x, (N3, C, H3, W3), dtype=jnp.float32)
    y3_ref = _reference(x3, w1, b1, w2, b2)
    y3 = jax.block_until_ready(se_block(x3, w1, b1, w2, b2))
    assert jnp.allclose(y3, y3_ref, atol=1e-5, rtol=1e-5), "ragged single-pass mismatch"
    y3c = jax.block_until_ready(se_block(x3, w1, b1, w2, b2,
                                         block_budget_bytes=512))
    assert jnp.allclose(y3c, y3_ref, atol=1e-5, rtol=1e-5), "ragged chunked mismatch"

    print("KERNEL_OK")
</pallas_src>

<mosaic_0001>
module attributes {stable_mosaic.version = 11 : i64} {
  func.func @_se_kernel(%arg0: i32, %arg1: memref<2x8x256xf32, #tpu.memory_space<vmem>>, %arg2: memref<8x2xf32, #tpu.memory_space<vmem>>, %arg3: memref<1x2xf32, #tpu.memory_space<vmem>>, %arg4: memref<2x8xf32, #tpu.memory_space<vmem>>, %arg5: memref<1x8xf32, #tpu.memory_space<vmem>>, %arg6: memref<2x8x256xf32, #tpu.memory_space<vmem>>) attributes {dimension_semantics = [#tpu.dimension_semantics<parallel>], iteration_bounds = array<i64: 1>, scalar_prefetch = 0 : i64, scratch_operands = 0 : i64, tpu.core_type = #tpu.core_type<tc>, window_params = [{transform_indices = @transform_0, window_bounds = array<i64: 2, 8, 256>}, {pipeline_mode = #tpu.pipeline_mode<synchronous>, transform_indices = @transform_1, window_bounds = array<i64: 8, 2>}, {pipeline_mode = #tpu.pipeline_mode<synchronous>, transform_indices = @transform_2, window_bounds = array<i64: 1, 2>}, {pipeline_mode = #tpu.pipeline_mode<synchronous>, transform_indices = @transform_3, window_bounds = array<i64: 2, 8>}, {pipeline_mode = #tpu.pipeline_mode<synchronous>, transform_indices = @transform_4, window_bounds = array<i64: 1, 8>}, {transform_indices = @transform_5, window_bounds = array<i64: 2, 8, 256>}]} {
    %c0 = arith.constant 0 : index
    %c0_0 = arith.constant 0 : index
    %c0_1 = arith.constant 0 : index
    %0 = vector.load %arg1[%c0, %c0_0, %c0_1] : memref<2x8x256xf32, #tpu.memory_space<vmem>>, vector<2x8x256xf32>
    %cst = arith.constant dense<0.000000e+00> : vector<2x8xf32>
    %1 = vector.multi_reduction <add>, %0, %cst [2] : vector<2x8x256xf32> to vector<2x8xf32>
    %cst_2 = arith.constant 3.906250e-03 : f32
    %2 = vector.broadcast %cst_2 : f32 to vector<2x8xf32>
    %3 = arith.mulf %1, %2 : vector<2x8xf32>
    %c0_3 = arith.constant 0 : index
    %c0_4 = arith.constant 0 : index
    %4 = vector.load %arg2[%c0_3, %c0_4] : memref<8x2xf32, #tpu.memory_space<vmem>>, vector<8x2xf32>
    %cst_5 = arith.constant dense<0.000000e+00> : vector<2x2xf32>
    %5 = tpu.matmul %3, %4, %cst_5 {dimension_numbers = #tpu.dot_dimension_numbers<[1], [0], [0], [1], [0, 0, 1, 1], [], []>} : vector<2x8xf32>, vector<8x2xf32>, vector<2x2xf32> -> vector<2x2xf32>
    %c0_6 = arith.constant 0 : index
    %c0_7 = arith.constant 0 : index
    %6 = vector.load %arg3[%c0_6, %c0_7] : memref<1x2xf32, #tpu.memory_space<vmem>>, vector<1x2xf32>
    %7 = vector.broadcast %6 : vector<1x2xf32> to vector<2x2xf32>
    %8 = arith.addf %5, %7 : vector<2x2xf32>
    %9 = arith.negf %8 : vector<2x2xf32>
    %10 = math.exp %9 : vector<2x2xf32>
    %cst_8 = arith.constant 1.000000e+00 : f32
    %11 = vector.broadcast %cst_8 : f32 to vector<2x2xf32>
    %12 = arith.addf %11, %10 : vector<2x2xf32>
    %13 = arith.divf %11, %12 : vector<2x2xf32>
    %14 = arith.mulf %8, %13 : vector<2x2xf32>
    %c0_9 = arith.constant 0 : index
    %c0_10 = arith.constant 0 : index
    %15 = vector.load %arg4[%c0_9, %c0_10] : memref<2x8xf32, #tpu.memory_space<vmem>>, vector<2x8xf32>
    %cst_11 = arith.constant dense<0.000000e+00> : vector<2x8xf32>
    %16 = tpu.matmul %14, %15, %cst_11 {dimension_numbers = #tpu.dot_dimension_numbers<[1], [0], [0], [1], [0, 0, 1, 1], [], []>} : vector<2x2xf32>, vector<2x8xf32>, vector<2x8xf32> -> vector<2x8xf32>
    %c0_12 = arith.constant 0 : index
    %c0_13 = arith.constant 0 : index
    %17 = vector.load %arg5[%c0_12, %c0_13] : memref<1x8xf32, #tpu.memory_space<vmem>>, vector<1x8xf32>
    %18 = vector.broadcast %17 : vector<1x8xf32> to vector<2x8xf32>
    %19 = arith.addf %16, %18 : vector<2x8xf32>
    %20 = arith.negf %19 : vector<2x8xf32>
    %21 = math.exp %20 : vector<2x8xf32>
    %cst_14 = arith.constant 1.000000e+00 : f32
    %22 = vector.broadcast %cst_14 : f32 to vector<2x8xf32>
    %23 = arith.addf %22, %21 : vector<2x8xf32>
    %24 = arith.divf %22, %23 : vector<2x8xf32>
    %c0_15 = arith.constant 0 : index
    %c0_16 = arith.constant 0 : index
    %c0_17 = arith.constant 0 : index
    %25 = vector.load %arg1[%c0_15, %c0_16, %c0_17] : memref<2x8x256xf32, #tpu.memory_space<vmem>>, vector<2x8x256xf32>
    %26 = vector.shape_cast %24 : vector<2x8xf32> to vector<2x8x1xf32>
    %27 = vector.broadcast %26 : vector<2x8x1xf32> to vector<2x8x256xf32>
    %28 = arith.mulf %25, %27 : vector<2x8x256xf32>
    %c0_18 = arith.constant 0 : index
    %c0_19 = arith.constant 0 : index
    %c0_20 = arith.constant 0 : index
    %29 = vector.load %arg6[%c0_18, %c0_19, %c0_20] : memref<2x8x256xf32, #tpu.memory_space<vmem>>, vector<2x8x256xf32>
    tpu.vector_store %arg6[%c0_18, %c0_19, %c0_20], %28 {strides = array<i32>} : memref<2x8x256xf32, #tpu.memory_space<vmem>>, vector<2x8x256xf32>,
    return
  }
  func.func @transform_0(%arg0: i32) -> (i32, i32, i32) {
    %c0_i32 = arith.constant 0 : i32
    %c0_i32_0 = arith.constant 0 : i32
    %c0_i32_1 = arith.constant 0 : i32
    return %arg0, %c0_i32, %c0_i32_0 : i32, i32, i32
  }
  func.func @transform_1(%arg0: i32) -> (i32, i32) {
    %c0_i32 = arith.constant 0 : i32
    %c0_i32_0 = arith.constant 0 : i32
    %c0_i32_1 = arith.constant 0 : i32
    return %c0_i32, %c0_i32_0 : i32, i32
  }
  func.func @transform_2(%arg0: i32) -> (i32, i32) {
    %c0_i32 = arith.constant 0 : i32
    %c0_i32_0 = arith.constant 0 : i32
    %c0_i32_1 = arith.constant 0 : i32
    return %c0_i32, %c0_i32_0 : i32, i32
  }
  func.func @transform_3(%arg0: i32) -> (i32, i32) {
    %c0_i32 = arith.constant 0 : i32
    %c0_i32_0 = arith.constant 0 : i32
    %c0_i32_1 = arith.constant 0 : i32
    return %c0_i32, %c0_i32_0 : i32, i32
  }
  func.func @transform_4(%arg0: i32) -> (i32, i32) {
    %c0_i32 = arith.constant 0 : i32
    %c0_i32_0 = arith.constant 0 : i32
    %c0_i32_1 = arith.constant 0 : i32
    return %c0_i32, %c0_i32_0 : i32, i32
  }
  func.func @transform_5(%arg0: i32) -> (i32, i32, i32) {
    %c0_i32 = arith.constant 0 : i32
    %c0_i32_0 = arith.constant 0 : i32
    %c0_i32_1 = arith.constant 0 : i32
    return %arg0, %c0_i32, %c0_i32_0 : i32, i32, i32
  }
}

</mosaic_0001>

<llo_original>
// kernel: tpu_custom_call.1
$region0: #{tpu_custom_call.1}
  #allocation0 [shape = 'u32[]', space=smem, size = 0x4, offset = 0x4, fixed_abs, tag = 'smem constant byte address 0x4 - core index']
  #allocation1 [shape = 'u32[72,128]{1,0:T(1,128)}', space=vmem, size = 0x9000, scoped, tag = 'internal scratch']
  %s0 = inlined_call_operand.hbm [shape: f32[2,8,256], index: 0, kind: input, shape index: {}]
  %s1 = inlined_call_operand.vmem [shape: f32[8,2], index: 1, kind: input, shape index: {}]
  %s2 = inlined_call_operand.vmem [shape: f32[1,2], index: 2, kind: input, shape index: {}]
  %s3 = inlined_call_operand.vmem [shape: f32[2,8], index: 3, kind: input, shape index: {}]
  %s4 = inlined_call_operand.vmem [shape: f32[1,8], index: 4, kind: input, shape index: {}]
  %s5 = inlined_call_operand.hbm [shape: f32[2,8,256], index: 5, kind: output, shape index: {}]
  %s6 = sld [smem:[#allocation0]]
  $region34: #{tpu_custom_call.1} parent=0
    _
  %s8 = ssub.s32 1, %s6
  %s9 = scalar_select 0, %s8, %s6
  $region1: #{tpu_custom_call.1} parent=0
    #allocation2 [shape = 'u8[16384]{0}', space=vmem, size = 0x4000, scoped, tag = 'input window, operand 0, single buffered']
    #allocation3 [shape = 's32[1]{0}', space=sflag, size = 0x4, scoped, tag = 'scoped memory for tpu_custom_call.1']
    #allocation4 [shape = 's32[1]{0}', space=sflag, size = 0x4, scoped, tag = 'scoped memory for tpu_custom_call.1']
    #allocation5 [shape = 'u8[16384]{0}', space=vmem, size = 0x4000, scoped, tag = 'output window, operand 0, single buffered']
    %10 = vsyncpa [#allocation3], 0
    %11 = vsyncpa [#allocation4], 0
    // Predicated region
    $region2: #{tpu_custom_call.1} parent=1 // pred_check
      _
    $region3: #{tpu_custom_call.1} parent=1 // pred_check_branch
      %13 = sbr.rel (0) target = $region5
    $region4: #{tpu_custom_call.1} parent=1 // pred_region
      %15 = vsyncadd [#allocation3], 0
      %s16 = sshll.u32 %s0, 4
      %s17 = int_to_ptr.hbm [resolvable:$true] %s16
      %s18 = sshll.u32 [#allocation2], 4
      %s19 = int_to_ptr.vmem [resolvable:$true] %s18
      %24 = dma.hbm_to_vmem [thread:$0]  %s17, 512, %s19, [#allocation3], 256, 256, 16
    $region5: #{tpu_custom_call.1} parent=1 // pred_fallthru
      _
    // Predicated region
    $region6: #{tpu_custom_call.1} parent=1 // pred_check
      _
    $region7: #{tpu_custom_call.1} parent=1 // pred_check_branch
      %26 = sbr.rel (0) target = $region9
    $region8: #{tpu_custom_call.1} parent=1 // pred_region
      _
    $region9: #{tpu_custom_call.1} parent=1 // pred_fallthru
      _
    // Predicated region
    $region10: #{tpu_custom_call.1} parent=1 // pred_check
      _
    $region11: #{tpu_custom_call.1} parent=1 // pred_check_branch
      %28 = sbr.rel (0) target = $region13
    $region12: #{tpu_custom_call.1} parent=1 // pred_region
      _
    $region13: #{tpu_custom_call.1} parent=1 // pred_fallthru
      _
    // Predicated region
    $region14: #{tpu_custom_call.1} parent=1 // pred_check
      _
    $region15: #{tpu_custom_call.1} parent=1 // pred_check_branch
      %30 = sbr.rel (0) target = $region17
    $region16: #{tpu_custom_call.1} parent=1 // pred_region
      _
    $region17: #{tpu_custom_call.1} parent=1 // pred_fallthru
      _
    // Predicated region
    $region18: #{tpu_custom_call.1} parent=1 // pred_check
      _
    $region19: #{tpu_custom_call.1} parent=1 // pred_check_branch
      %32 = sbr.rel (0) target = $region21
    $region20: #{tpu_custom_call.1} parent=1 // pred_region
      _
    $region21: #{tpu_custom_call.1} parent=1 // pred_fallthru
      _
    // Predicated region
    $region22: #{tpu_custom_call.1} parent=1 // pred_check
      _
    $region23: #{tpu_custom_call.1} parent=1 // pred_check_branch
      %34 = sbr.rel (0) target = $region25
    $region24: #{tpu_custom_call.1} parent=1 // pred_region
      %36 = dma.done [#allocation3], 512
    $region25: #{tpu_custom_call.1} parent=1 // pred_fallthru
      _
    %v37 = vld [vmem:[#allocation2] sm:$0xff]
    %v38 = vld [vmem:[#allocation2 + $0x8] sm:$0xff]
    %v39 = vld [vmem:[#allocation2 + $0x10] sm:$0xff]
    %v40 = vld [vmem:[#allocation2 + $0x18] sm:$0xff]
    %v41 = vadd.f32 %v37, %v38
    %42 = vadd.xlane.f32.xlu0 %v41
    %v43 = vpop.xlane.xlu0 %42
    %v44 = vadd.f32 %v39, %v40
    %45 = vadd.xlane.f32.xlu0 %v44
    %v46 = vpop.xlane.xlu0 %45
    %v47 = vmul.f32 %v43, 0.00390625
    %v48 = vmul.f32 %v46, 0.00390625
    %v49 = vld [vmem:[%s1] sm:$0xff]
    %v50 = vld [vmem:[%s2] sm:$0x1]
    %v52 = vperm.slane %v50, 0
    %v56 = vlaneseq
    %v57 = vand.u32 %v56, 127
    %v58 = vperm.slane %v47, %v57
    %v59 = vperm.slane %v48, %v57
    %vm60 = vcmask 1041409
    %v61 = vsel %vm60, %v59, %v58
    %vm62 = vcmask 64512
    %v63 = vsel %vm62, %v61, 0
    %65 = vmatpush.msra.mxu0 0.0
    %66 = vmatpush.msra.mxu0 0.0
    %67 = vmatpush.msra.mxu0 0.0
    %68 = vmatpush.msra.mxu0 0.0
    %69 = vmatpush.msra.mxu0 0.0
    %70 = vmatpush.msra.mxu0 0.0
    %71 = vmatpush.msra.mxu0 0.0
    %72 = vmatpush.msra.mxu0 0.0
    %73 = vmatpush.msra.mxu0 0.0
    %74 = vmatpush.msra.mxu0 0.0
    %75 = vmatpush.msra.mxu0 0.0
    %76 = vmatpush.msra.mxu0 0.0
    %77 = vmatpush.msra.mxu0 0.0
    %78 = vmatpush.msra.mxu0 0.0
    %79 = vmatpush.msra.mxu0 0.0
    %80 = vmatpush.msra.mxu0 %v49
    %81 = vmatmul.f32.gmra.mxu0 %v63
    %v82 = vpop.f32.mrf.mxu0
    %v83 = vadd.f32 %v52, %v82
    %84 = vdwg.mxu0
    %v85 = vxor.u32 %v83, 2147483648
    %v86 = vmul.f32 %v85, 1.442695
    %v87 = vpow.pop %v86
    %v88 = vadd.f32 %v87, 1.0
    %v89 = vrcp.pop %v88
    %v90 = vmul.f32 %v88, %v89
    %v91 = vsub.f32 1.0, %v90
    %v92 = vmul.f32 %v89, %v91
    %v93 = vadd.f32 %v89, %v92
    %vm94 = vweird.f32 %v88
    %vm95 = vweird.f32 %v89
    %vm96 = vmor %vm94, %vm95
    %v97 = vsel %vm96, %v89, %v93
    %v98 = vand.u32 2147483647, %v88
    %vm99 = vcmp.eq.f32.partialorder %v98, 8.507059e+37
    %v100 = vand.u32 %v88, 2147483648
    %v101 = vor.u32 1.1754944e-38, %v100
    %v102 = vsel %vm99, %v101, %v97
    %v103 = vmul.f32 1.0, %v102
    %v104 = vmul.f32 %v83, %v103
    %v105 = vld [vmem:[%s3] sm:$0x3]
    %v106 = vld [vmem:[%s4] sm:$0x1]
    %v108 = vperm.slane %v106, 0
    %vm110 = vcmask 15360
    %v112 = vsel %vm110, %v104, 0
    %vm114 = vcmask 1041408
    %v116 = vsel %vm114, %v105, 0
    %118 = vmatpush.msra.mxu0 0.0
    %119 = vmatpush.msra.mxu0 0.0
    %120 = vmatpush.msra.mxu0 0.0
    %121 = vmatpush.msra.mxu0 0.0
    %122 = vmatpush.msra.mxu0 0.0
    %123 = vmatpush.msra.mxu0 0.0
    %124 = vmatpush.msra.mxu0 0.0
    %125 = vmatpush.msra.mxu0 0.0
    %126 = vmatpush.msra.mxu0 0.0
    %127 = vmatpush.msra.mxu0 0.0
    %128 = vmatpush.msra.mxu0 0.0
    %129 = vmatpush.msra.mxu0 0.0
    %130 = vmatpush.msra.mxu0 0.0
    %131 = vmatpush.msra.mxu0 0.0
    %132 = vmatpush.msra.mxu0 0.0
    %133 = vmatpush.msra.mxu0 %v116
    %134 = vmatmul.f32.gmra.mxu0 %v112
    %v135 = vpop.f32.mrf.mxu0
    %v136 = vadd.f32 %v108, %v135
    %137 = vdwg.mxu0
    %v138 = vxor.u32 %v136, 2147483648
    %v139 = vmul.f32 %v138, 1.442695
    %v140 = vpow.pop %v139
    %v141 = vadd.f32 %v140, 1.0
    %v142 = vrcp.pop %v141
    %v143 = vmul.f32 %v141, %v142
    %v144 = vsub.f32 1.0, %v143
    %v145 = vmul.f32 %v142, %v144
    %v146 = vadd.f32 %v142, %v145
    %vm147 = vweird.f32 %v141
    %vm148 = vweird.f32 %v142
    %vm149 = vmor %vm147, %vm148
    %v150 = vsel %vm149, %v142, %v146
    %v151 = vand.u32 2147483647, %v141
    %vm152 = vcmp.eq.f32.partialorder %v151, 8.507059e+37
    %v153 = vand.u32 %v141, 2147483648
    %v154 = vor.u32 1.1754944e-38, %v153
    %v155 = vsel %vm152, %v154, %v150
    %v156 = vmul.f32 1.0, %v155
    %v157 = vperm.slane %v156, 0
    %v158 = vlaneseq
    %v159 = vshrl.u32 %v158, 7
    %161 = vset.pattern.permute.xlu0 %v159
    %162 = vperm.xlu0 %161, %v157
    %v163 = vpop.permute.xlu0 %162
    %v164 = vperm.slane %v156, 1
    %v165 = vlaneseq
    %v166 = vshrl.u32 %v165, 7
    %168 = vset.pattern.permute.xlu0 %v166
    %169 = vperm.xlu0 %168, %v164
    %v170 = vpop.permute.xlu0 %169
    %v171 = vmul.f32 %v37, %v163
    %v172 = vmul.f32 %v38, %v163
    %v173 = vmul.f32 %v39, %v170
    %v174 = vmul.f32 %v40, %v170
    %175 = vst [vmem:[#allocation5] sm:$0xff] %v171
    %176 = vst [vmem:[#allocation5 + $0x8] sm:$0xff] %v172
    %177 = vst [vmem:[#allocation5 + $0x10] sm:$0xff] %v173
    %178 = vst [vmem:[#allocation5 + $0x18] sm:$0xff] %v174
    // Predicated region
    $region26: #{tpu_custom_call.1} parent=1 // pred_check
      _
    $region27: #{tpu_custom_call.1} parent=1 // pred_check_branch
      %180 = sbr.rel (0) target = $region29
    $region28: #{tpu_custom_call.1} parent=1 // pred_region
      %182 = vsyncadd [#allocation4], 0
      %s183 = sshll.u32 [#allocation5], 4
      %s184 = int_to_ptr.vmem [resolvable:$true] %s183
      %s185 = sshll.u32 %s5, 4
      %s186 = int_to_ptr.hbm [resolvable:$true] %s185
      %191 = dma.vmem_to_hbm [thread:$0]  %s184, 512, %s186, [#allocation4], 256, 256, 16
    $region29: #{tpu_custom_call.1} parent=1 // pred_fallthru
      _
    // Predicated region
    $region30: #{tpu_custom_call.1} parent=1 // pred_check
      _
    $region31: #{tpu_custom_call.1} parent=1 // pred_check_branch
      %193 = sbr.rel (0) target = $region33
    $region32: #{tpu_custom_call.1} parent=1 // pred_region
      %195 = dma.done [#allocation4], 512
    $region33: #{tpu_custom_call.1} parent=1 // pred_fallthru
      _
    %196 = vsyncpa [#allocation3], 1
    %197 = vsyncpa [#allocation4], 1

</llo_original>
